<compile_context>
chip_gen: v5e
topology: v5e:2x2
jax: 0.10.0
libtpu: 0.0.40
codegen_flags: <defaults>
</compile_context>

<pallas_src>
import functools

import jax
import jax.numpy as jnp
from jax.experimental import pallas as pl
from jax.experimental.pallas import tpu as pltpu


# ---------------------------------------------------------------------------
# Generation-aware VMEM budgets.
# ---------------------------------------------------------------------------
def _vmem_limits():
    try:
        cap = int(pltpu.get_tpu_info().vmem_capacity_bytes)
    except Exception:  # interpret mode / older API — assume 128 MiB parts
        cap = 128 * 2**20
    if cap <= 64 * 2**20:            # v7x-class TensorCore (64 MiB VMEM)
        limit = 48 * 2**20
    else:                            # v5e / v6e (128 MiB VMEM)
        limit = 96 * 2**20
    tile_budget = int(limit * 0.75)  # headroom for untiled operands / scratch
    return limit, tile_budget


# ---------------------------------------------------------------------------
# HW-tile selection: largest multiple of 128 that divides hw, fits the
# double-buffered VMEM budget, keeps a single input block near the per-block
# byte target, and leaves at least `min_tiles` grid steps along HW.
# ---------------------------------------------------------------------------
def _pick_hw_tile(hw, lane_bytes_total, lane_bytes_block, budget_bytes,
                  target_block_bytes=2 * 2**20, min_tiles=1):
    cap = min(hw,
              max(128, budget_bytes // max(1, lane_bytes_total)),
              max(128, target_block_bytes // max(1, lane_bytes_block)))
    if min_tiles > 1:
        cap = min(cap, max(128, hw // min_tiles))
    cap = max(128, (cap // 128) * 128)
    t = cap
    while t >= 128:
        if hw % t == 0:
            return t
        t -= 128
    return min(hw, 128)


# ---------------------------------------------------------------------------
# Kernel 1: GAP of (low + high) over the spatial axis (tiled reduction).
#   sum_ref (C, 1) is resident across the innermost ("arbitrary") grid axis.
#   Inputs may be bf16; the sum is accumulated in f32.
# ---------------------------------------------------------------------------
def _gap_sum_kernel(low_ref, high_ref, sum_ref):
    @pl.when(pl.program_id(2) == 0)
    def _():
        sum_ref[...] = jnp.zeros_like(sum_ref)

    x = low_ref[...].astype(jnp.float32) + high_ref[...].astype(jnp.float32)
    sum_ref[...] += jnp.sum(x, axis=-1, keepdims=True)


def gap_mean(low, high, hw_true, tile_budget, vmem_limit):
    # low/high: (N, C, HWp) (HWp multiple of 128) -> (N, C) mean over hw_true
    N, C, HWp = low.shape
    isz = jnp.dtype(low.dtype).itemsize
    lane_total = 2 * 2 * C * isz              # 2 inputs x double buffer
    lane_block = C * isz
    min_tiles = 2 if (N == 1 and HWp >= 256) else 1
    T = _pick_hw_tile(HWp, lane_total, lane_block, tile_budget,
                      min_tiles=min_tiles)
    n_tiles = HWp // T
    # Parallel HW split so both v7x TensorCores get work even when N == 1.
    S = 2 if (n_tiles >= 2 and n_tiles % 2 == 0) else 1
    steps = n_tiles // S

    sums = pl.pallas_call(
        _gap_sum_kernel,
        grid=(N, S, steps),
        in_specs=[
            pl.BlockSpec((None, C, T),
                         lambda n, s, t, steps=steps: (n, 0, s * steps + t)),
            pl.BlockSpec((None, C, T),
                         lambda n, s, t, steps=steps: (n, 0, s * steps + t)),
        ],
        out_specs=pl.BlockSpec((None, None, C, 1), lambda n, s, t: (n, s, 0, 0)),
        out_shape=jax.ShapeDtypeStruct((N, S, C, 1), jnp.float32),
        compiler_params=pltpu.CompilerParams(
            dimension_semantics=("parallel", "parallel", "arbitrary"),
            vmem_limit_bytes=vmem_limit),
    )(low, high)
    return jnp.sum(sums, axis=1)[:, :, 0] / hw_true


# ---------------------------------------------------------------------------
# Kernel 2 (fused hot path): attention mix + final 1x1 conv.
#   mixed = high * high_att + low * low_att        (per-channel scalars, f32)
#   out   = W_out @ mixed + b_out                  (1x1 conv over the tile)
# low/high read once (bf16), out written once (f32) per tile.
# ---------------------------------------------------------------------------
def _sf_out_kernel(low_ref, high_ref, latt_ref, hatt_ref, w_ref, b_ref, o_ref,
                   *, mxu_bf16):
    low = low_ref[...].astype(jnp.float32)
    high = high_ref[...].astype(jnp.float32)
    mixed = high * hatt_ref[...] + low * latt_ref[...]        # (C, T), f32
    w = w_ref[...]
    if mxu_bf16:
        # Large C: bf16 operands for native MXU throughput (esp. v5e),
        # f32 accumulation via preferred_element_type.
        mixed = mixed.astype(jnp.bfloat16)
        w = w.astype(jnp.bfloat16)
    o_ref[...] = (
        jnp.dot(w, mixed, preferred_element_type=jnp.float32) + b_ref[...]
    ).astype(o_ref.dtype)


def sf_modulate_out(low, high, low_att, high_att, w_out, b_out,
                    tile_budget, vmem_limit):
    # low/high: (N, C, HWp); atts: (N, C, 1); w_out: (C, C); b_out: (C, 1)
    N, C, HWp = low.shape
    in_isz = jnp.dtype(low.dtype).itemsize
    out_isz = jnp.dtype(jnp.float32).itemsize
    lane_total = C * (2 * 2 * in_isz + 2 * out_isz)   # 2 ins + 1 out, x2 buffers
    lane_block = C * in_isz
    min_tiles = 2 if (N == 1 and HWp >= 256) else 1
    T = _pick_hw_tile(HWp, lane_total, lane_block, tile_budget,
                      min_tiles=min_tiles)

    kernel = functools.partial(_sf_out_kernel, mxu_bf16=(C >= 128))
    return pl.pallas_call(
        kernel,
        grid=(N, HWp // T),
        in_specs=[
            pl.BlockSpec((None, C, T), lambda n, t: (n, 0, t)),
            pl.BlockSpec((None, C, T), lambda n, t: (n, 0, t)),
            pl.BlockSpec((None, C, 1), lambda n, t: (n, 0, 0)),
            pl.BlockSpec((None, C, 1), lambda n, t: (n, 0, 0)),
            pl.BlockSpec((C, C), lambda n, t: (0, 0)),
            pl.BlockSpec((C, 1), lambda n, t: (0, 0)),
        ],
        out_specs=pl.BlockSpec((None, C, T), lambda n, t: (n, 0, t)),
        out_shape=jax.ShapeDtypeStruct((N, C, HWp), jnp.float32),
        compiler_params=pltpu.CompilerParams(
            dimension_semantics=("parallel", "parallel"),
            vmem_limit_bytes=vmem_limit),
    )(low, high, low_att, high_att, w_out, b_out)


# ---------------------------------------------------------------------------
# SFconv forward (matches the PyTorch module's semantics)
# ---------------------------------------------------------------------------
def sfconv_forward(low, high, params, use_pallas=True, io_dtype=jnp.bfloat16):
    N, C, H, W = low.shape
    HW = H * W
    low3 = low.reshape(N, C, HW)
    high3 = high.reshape(N, C, HW)

    # Pad HW up to a multiple of 128 (lane-dense tiles for any image size).
    HWp = ((HW + 127) // 128) * 128
    if HWp != HW:
        pad = ((0, 0), (0, 0), (0, HWp - HW))
        low3 = jnp.pad(low3, pad)
        high3 = jnp.pad(high3, pad)

    # bf16 HBM I/O for the memory-bound slabs (accumulation stays f32).
    low_io = low3.astype(io_dtype)
    high_io = high3.astype(io_dtype)

    vmem_limit, tile_budget = _vmem_limits()

    # ---- attention head: GAP -> fc -> fcs[0]/fcs[1] -> softmax (tiny) ----
    if use_pallas:
        gap = gap_mean(low_io, high_io, HW, tile_budget, vmem_limit)      # (N, C)
    else:
        gap = jnp.sum(low_io.astype(jnp.float32) + high_io.astype(jnp.float32),
                      axis=-1) / HW
    fea_z = gap @ params["fc_w"].T + params["fc_b"]                        # (N, d)
    high_pre = fea_z @ params["fcs0_w"].T + params["fcs0_b"]               # (N, C)
    low_pre = fea_z @ params["fcs1_w"].T + params["fcs1_b"]                # (N, C)
    # torch nn.Softmax(dim=1) on the concatenated (N, 2C, 1, 1) tensor:
    att = jax.nn.softmax(jnp.concatenate([high_pre, low_pre], axis=1), axis=1)
    high_att, low_att = att[:, :C], att[:, C:]

    # ---- fused Pallas hot path: attention mix + out 1x1 conv ----
    if use_pallas:
        out = sf_modulate_out(
            low_io, high_io,
            low_att.reshape(N, C, 1), high_att.reshape(N, C, 1),
            params["out_w"], params["out_b"].reshape(C, 1),
            tile_budget, vmem_limit)
    else:  # pure-jnp reference (same bf16 I/O path, f32 compute)
        mixed = (high_io.astype(jnp.float32) * high_att[:, :, None]
                 + low_io.astype(jnp.float32) * low_att[:, :, None])
        out = jnp.einsum("oc,nch->noh", params["out_w"], mixed,
                         preferred_element_type=jnp.float32) \
            + params["out_b"][None, :, None]

    out = out[:, :, :HW]
    return out.reshape(N, C, H, W)


def init_params(key, C, r=2, L=32):
    # SFconv(features=C, M=2, r=2, L=32): d = max(C / r, L); all 1x1 convs.
    d = max(C // r, L)
    ks = jax.random.split(key, 8)

    def nrm(k, shape, scale=0.1):
        return scale * jax.random.normal(k, shape, jnp.float32)

    return {
        "fc_w": nrm(ks[0], (d, C)),   "fc_b": nrm(ks[1], (d,)),     # fc
        "fcs0_w": nrm(ks[2], (C, d)), "fcs0_b": nrm(ks[3], (C,)),   # fcs[0]
        "fcs1_w": nrm(ks[4], (C, d)), "fcs1_b": nrm(ks[5], (C,)),   # fcs[1]
        "out_w": nrm(ks[6], (C, C)),  "out_b": nrm(ks[7], (C,)),    # out
    }


if __name__ == "__main__":
    key = jax.random.PRNGKey(0)
    k_low, k_high, k_p = jax.random.split(key, 3)

    # C=8 fills the 8 sublanes exactly; HW = 256 is lane-dense (2 x 128).
    N, C, H, W = 2, 8, 16, 16
    low = jax.random.normal(k_low, (N, C, H, W), jnp.float32)
    high = jax.random.normal(k_high, (N, C, H, W), jnp.float32)
    params = init_params(k_p, C)

    fwd = jax.jit(functools.partial(sfconv_forward, use_pallas=True))
    out = jax.block_until_ready(fwd(low, high, params))
    assert out.shape == (N, C, H, W)

    # Cross-check the Pallas path against a pure-jnp reference (same bf16 I/O).
    ref = jax.block_until_ready(
        sfconv_forward(low, high, params, use_pallas=False))
    max_err = float(jnp.max(jnp.abs(out - ref)))
    assert max_err < 5e-3, f"mismatch vs reference: {max_err}"

    print("KERNEL_OK")
</pallas_src>

<mosaic_0001>
module attributes {stable_mosaic.version = 11 : i64} {
  func.func @_gap_sum_kernel(%arg0: i32, %arg1: i32, %arg2: i32, %arg3: memref<1x8x256xbf16, #tpu.memory_space<vmem>>, %arg4: memref<1x8x256xbf16, #tpu.memory_space<vmem>>, %arg5: memref<1x1x8x1xf32, #tpu.memory_space<vmem>>) attributes {dimension_semantics = [#tpu.dimension_semantics<parallel>, #tpu.dimension_semantics<parallel>, #tpu.dimension_semantics<arbitrary>], iteration_bounds = array<i64: 2, 1, 1>, scalar_prefetch = 0 : i64, scratch_operands = 0 : i64, tpu.core_type = #tpu.core_type<tc>, window_params = [{transform_indices = @transform_0, window_bounds = array<i64: 1, 8, 256>}, {transform_indices = @transform_1, window_bounds = array<i64: 1, 8, 256>}, {transform_indices = @transform_2, window_bounds = array<i64: 1, 1, 8, 1>}]} {
    %c0_i32 = arith.constant 0 : i32
    %0 = arith.cmpi eq, %arg2, %c0_i32 : i32
    %1 = arith.extui %0 : i1 to i32
    %c0_i32_0 = arith.constant 0 : i32
    %2 = arith.cmpi ne, %1, %c0_i32_0 : i32
    scf.if %2 {
      %cst_14 = arith.constant 0.000000e+00 : f32
      %18 = vector.broadcast %cst_14 : f32 to vector<8x1xf32>
      %c0_15 = arith.constant 0 : index
      %c0_16 = arith.constant 0 : index
      %c0_17 = arith.constant 0 : index
      %c0_18 = arith.constant 0 : index
      %19 = vector.load %arg5[%c0_15, %c0_16, %c0_17, %c0_18] : memref<1x1x8x1xf32, #tpu.memory_space<vmem>>, vector<1x1x8x1xf32>
      %20 = vector.shape_cast %19 : vector<1x1x8x1xf32> to vector<8x1xf32>
      %21 = vector.shape_cast %18 : vector<8x1xf32> to vector<1x1x8x1xf32>
      tpu.vector_store %arg5[%c0_15, %c0_16, %c0_17, %c0_18], %21 {strides = array<i32>} : memref<1x1x8x1xf32, #tpu.memory_space<vmem>>, vector<1x1x8x1xf32>,
    } else {
    }
    %c0 = arith.constant 0 : index
    %c0_1 = arith.constant 0 : index
    %c0_2 = arith.constant 0 : index
    %3 = vector.load %arg3[%c0, %c0_1, %c0_2] : memref<1x8x256xbf16, #tpu.memory_space<vmem>>, vector<1x8x256xbf16>
    %4 = vector.shape_cast %3 : vector<1x8x256xbf16> to vector<8x256xbf16>
    %5 = arith.extf %4 : vector<8x256xbf16> to vector<8x256xf32>
    %c0_3 = arith.constant 0 : index
    %c0_4 = arith.constant 0 : index
    %c0_5 = arith.constant 0 : index
    %6 = vector.load %arg4[%c0_3, %c0_4, %c0_5] : memref<1x8x256xbf16, #tpu.memory_space<vmem>>, vector<1x8x256xbf16>
    %7 = vector.shape_cast %6 : vector<1x8x256xbf16> to vector<8x256xbf16>
    %8 = arith.extf %7 : vector<8x256xbf16> to vector<8x256xf32>
    %9 = arith.addf %5, %8 : vector<8x256xf32>
    %c0_6 = arith.constant 0 : index
    %c0_7 = arith.constant 0 : index
    %c0_8 = arith.constant 0 : index
    %c0_9 = arith.constant 0 : index
    %10 = vector.load %arg5[%c0_6, %c0_7, %c0_8, %c0_9] : memref<1x1x8x1xf32, #tpu.memory_space<vmem>>, vector<1x1x8x1xf32>
    %11 = vector.shape_cast %10 : vector<1x1x8x1xf32> to vector<8x1xf32>
    %cst = arith.constant dense<0.000000e+00> : vector<8xf32>
    %12 = vector.multi_reduction <add>, %9, %cst [1] : vector<8x256xf32> to vector<8xf32>
    %13 = vector.shape_cast %12 : vector<8xf32> to vector<8x1xf32>
    %14 = arith.addf %11, %13 : vector<8x1xf32>
    %c0_10 = arith.constant 0 : index
    %c0_11 = arith.constant 0 : index
    %c0_12 = arith.constant 0 : index
    %c0_13 = arith.constant 0 : index
    %15 = vector.load %arg5[%c0_10, %c0_11, %c0_12, %c0_13] : memref<1x1x8x1xf32, #tpu.memory_space<vmem>>, vector<1x1x8x1xf32>
    %16 = vector.shape_cast %15 : vector<1x1x8x1xf32> to vector<8x1xf32>
    %17 = vector.shape_cast %14 : vector<8x1xf32> to vector<1x1x8x1xf32>
    tpu.vector_store %arg5[%c0_10, %c0_11, %c0_12, %c0_13], %17 {strides = array<i32>} : memref<1x1x8x1xf32, #tpu.memory_space<vmem>>, vector<1x1x8x1xf32>,
    return
  }
  func.func @transform_0(%arg0: i32, %arg1: i32, %arg2: i32) -> (i32, i32, i32) {
    %c1_i32 = arith.constant 1 : i32
    %0 = arith.muli %arg1, %c1_i32 : i32
    %1 = arith.addi %0, %arg2 : i32
    %c0_i32 = arith.constant 0 : i32
    %c0_i32_0 = arith.constant 0 : i32
    return %arg0, %c0_i32, %1 : i32, i32, i32
  }
  func.func @transform_1(%arg0: i32, %arg1: i32, %arg2: i32) -> (i32, i32, i32) {
    %c1_i32 = arith.constant 1 : i32
    %0 = arith.muli %arg1, %c1_i32 : i32
    %1 = arith.addi %0, %arg2 : i32
    %c0_i32 = arith.constant 0 : i32
    %c0_i32_0 = arith.constant 0 : i32
    return %arg0, %c0_i32, %1 : i32, i32, i32
  }
  func.func @transform_2(%arg0: i32, %arg1: i32, %arg2: i32) -> (i32, i32, i32, i32) {
    %c0_i32 = arith.constant 0 : i32
    %c0_i32_0 = arith.constant 0 : i32
    %c0_i32_1 = arith.constant 0 : i32
    return %arg0, %arg1, %c0_i32, %c0_i32_0 : i32, i32, i32, i32
  }
}

module attributes {stable_mosaic.version = 11 : i64} {
  func.func @_sf_out_kernel(%arg0: i32, %arg1: i32, %arg2: memref<1x8x256xbf16, #tpu.memory_space<vmem>>, %arg3: memref<1x8x256xbf16, #tpu.memory_space<vmem>>, %arg4: memref<1x8x1xf32, #tpu.memory_space<vmem>>, %arg5: memref<1x8x1xf32, #tpu.memory_space<vmem>>, %arg6: memref<8x8xf32, #tpu.memory_space<vmem>>, %arg7: memref<8x1xf32, #tpu.memory_space<vmem>>, %arg8: memref<1x8x256xf32, #tpu.memory_space<vmem>>) attributes {dimension_semantics = [#tpu.dimension_semantics<parallel>, #tpu.dimension_semantics<parallel>], iteration_bounds = array<i64: 2, 1>, scalar_prefetch = 0 : i64, scratch_operands = 0 : i64, tpu.core_type = #tpu.core_type<tc>, window_params = [{transform_indices = @transform_0, window_bounds = array<i64: 1, 8, 256>}, {transform_indices = @transform_1, window_bounds = array<i64: 1, 8, 256>}, {transform_indices = @transform_2, window_bounds = array<i64: 1, 8, 1>}, {transform_indices = @transform_3, window_bounds = array<i64: 1, 8, 1>}, {pipeline_mode = #tpu.pipeline_mode<synchronous>, transform_indices = @transform_4, window_bounds = array<i64: 8, 8>}, {pipeline_mode = #tpu.pipeline_mode<synchronous>, transform_indices = @transform_5, window_bounds = array<i64: 8, 1>}, {transform_indices = @transform_6, window_bounds = array<i64: 1, 8, 256>}]} {
    %c0 = arith.constant 0 : index
    %c0_0 = arith.constant 0 : index
    %c0_1 = arith.constant 0 : index
    %0 = vector.load %arg2[%c0, %c0_0, %c0_1] : memref<1x8x256xbf16, #tpu.memory_space<vmem>>, vector<1x8x256xbf16>
    %1 = vector.shape_cast %0 : vector<1x8x256xbf16> to vector<8x256xbf16>
    %2 = arith.extf %1 : vector<8x256xbf16> to vector<8x256xf32>
    %c0_2 = arith.constant 0 : index
    %c0_3 = arith.constant 0 : index
    %c0_4 = arith.constant 0 : index
    %3 = vector.load %arg3[%c0_2, %c0_3, %c0_4] : memref<1x8x256xbf16, #tpu.memory_space<vmem>>, vector<1x8x256xbf16>
    %4 = vector.shape_cast %3 : vector<1x8x256xbf16> to vector<8x256xbf16>
    %5 = arith.extf %4 : vector<8x256xbf16> to vector<8x256xf32>
    %c0_5 = arith.constant 0 : index
    %c0_6 = arith.constant 0 : index
    %c0_7 = arith.constant 0 : index
    %6 = vector.load %arg5[%c0_5, %c0_6, %c0_7] : memref<1x8x1xf32, #tpu.memory_space<vmem>>, vector<1x8x1xf32>
    %7 = vector.shape_cast %6 : vector<1x8x1xf32> to vector<8x1xf32>
    %8 = vector.broadcast %7 : vector<8x1xf32> to vector<8x256xf32>
    %9 = arith.mulf %5, %8 : vector<8x256xf32>
    %c0_8 = arith.constant 0 : index
    %c0_9 = arith.constant 0 : index
    %c0_10 = arith.constant 0 : index
    %10 = vector.load %arg4[%c0_8, %c0_9, %c0_10] : memref<1x8x1xf32, #tpu.memory_space<vmem>>, vector<1x8x1xf32>
    %11 = vector.shape_cast %10 : vector<1x8x1xf32> to vector<8x1xf32>
    %12 = vector.broadcast %11 : vector<8x1xf32> to vector<8x256xf32>
    %13 = arith.mulf %2, %12 : vector<8x256xf32>
    %14 = arith.addf %9, %13 : vector<8x256xf32>
    %c0_11 = arith.constant 0 : index
    %c0_12 = arith.constant 0 : index
    %15 = vector.load %arg6[%c0_11, %c0_12] : memref<8x8xf32, #tpu.memory_space<vmem>>, vector<8x8xf32>
    %cst = arith.constant dense<0.000000e+00> : vector<8x256xf32>
    %16 = tpu.matmul %15, %14, %cst {dimension_numbers = #tpu.dot_dimension_numbers<[1], [0], [0], [1], [0, 0, 1, 1], [], []>} : vector<8x8xf32>, vector<8x256xf32>, vector<8x256xf32> -> vector<8x256xf32>
    %c0_13 = arith.constant 0 : index
    %c0_14 = arith.constant 0 : index
    %17 = vector.load %arg7[%c0_13, %c0_14] : memref<8x1xf32, #tpu.memory_space<vmem>>, vector<8x1xf32>
    %18 = vector.broadcast %17 : vector<8x1xf32> to vector<8x256xf32>
    %19 = arith.addf %16, %18 : vector<8x256xf32>
    %c0_15 = arith.constant 0 : index
    %c0_16 = arith.constant 0 : index
    %c0_17 = arith.constant 0 : index
    %20 = vector.load %arg8[%c0_15, %c0_16, %c0_17] : memref<1x8x256xf32, #tpu.memory_space<vmem>>, vector<1x8x256xf32>
    %21 = vector.shape_cast %20 : vector<1x8x256xf32> to vector<8x256xf32>
    %22 = vector.shape_cast %19 : vector<8x256xf32> to vector<1x8x256xf32>
    tpu.vector_store %arg8[%c0_15, %c0_16, %c0_17], %22 {strides = array<i32>} : memref<1x8x256xf32, #tpu.memory_space<vmem>>, vector<1x8x256xf32>,
    return
  }
  func.func @transform_0(%arg0: i32, %arg1: i32) -> (i32, i32, i32) {
    %c0_i32 = arith.constant 0 : i32
    %c0_i32_0 = arith.constant 0 : i32
    return %arg0, %c0_i32, %arg1 : i32, i32, i32
  }
  func.func @transform_1(%arg0: i32, %arg1: i32) -> (i32, i32, i32) {
    %c0_i32 = arith.constant 0 : i32
    %c0_i32_0 = arith.constant 0 : i32
    return %arg0, %c0_i32, %arg1 : i32, i32, i32
  }
  func.func @transform_2(%arg0: i32, %arg1: i32) -> (i32, i32, i32) {
    %c0_i32 = arith.constant 0 : i32
    %c0_i32_0 = arith.constant 0 : i32
    %c0_i32_1 = arith.constant 0 : i32
    return %arg0, %c0_i32, %c0_i32_0 : i32, i32, i32
  }
  func.func @transform_3(%arg0: i32, %arg1: i32) -> (i32, i32, i32) {
    %c0_i32 = arith.constant 0 : i32
    %c0_i32_0 = arith.constant 0 : i32
    %c0_i32_1 = arith.constant 0 : i32
    return %arg0, %c0_i32, %c0_i32_0 : i32, i32, i32
  }
  func.func @transform_4(%arg0: i32, %arg1: i32) -> (i32, i32) {
    %c0_i32 = arith.constant 0 : i32
    %c0_i32_0 = arith.constant 0 : i32
    %c0_i32_1 = arith.constant 0 : i32
    return %c0_i32, %c0_i32_0 : i32, i32
  }
  func.func @transform_5(%arg0: i32, %arg1: i32) -> (i32, i32) {
    %c0_i32 = arith.constant 0 : i32
    %c0_i32_0 = arith.constant 0 : i32
    %c0_i32_1 = arith.constant 0 : i32
    return %c0_i32, %c0_i32_0 : i32, i32
  }
  func.func @transform_6(%arg0: i32, %arg1: i32) -> (i32, i32, i32) {
    %c0_i32 = arith.constant 0 : i32
    %c0_i32_0 = arith.constant 0 : i32
    return %arg0, %c0_i32, %arg1 : i32, i32, i32
  }
}

</mosaic_0001>

<llo_original>
// kernel: sfconv_forward.3
$region0: #{sfconv_forward.3}
  #allocation0 [shape = 'u32[]', space=smem, size = 0x4, offset = 0x4, fixed_abs, tag = 'smem constant byte address 0x4 - core index']
  #allocation1 [shape = 'u32[72,128]{1,0:T(1,128)}', space=vmem, size = 0x9000, scoped, tag = 'internal scratch']
  %s0 = inlined_call_operand.vmem [shape: bf16[2,8,256], index: 0, kind: input, shape index: {}]
  %s1 = inlined_call_operand.vmem [shape: bf16[2,8,256], index: 1, kind: input, shape index: {}]
  %s2 = inlined_call_operand.vmem [shape: f32[2,8,1], index: 2, kind: input, shape index: {}]
  %s3 = inlined_call_operand.vmem [shape: f32[2,8,1], index: 3, kind: input, shape index: {}]
  %s4 = inlined_call_operand.vmem [shape: f32[8,8], index: 4, kind: input, shape index: {}]
  %s5 = inlined_call_operand.vmem [shape: f32[8,1], index: 5, kind: input, shape index: {}]
  %s6 = inlined_call_operand.vmem [shape: f32[2,8,256], index: 6, kind: output, shape index: {}]
  %s7 = sld [smem:[#allocation0]]
  $region57: #{sfconv_forward.3} parent=0
    _
  %s9 = ssub.s32 1, %s7
  %s10 = scalar_select 0, %s9, %s7
  loop: start=0, step=1, limit=4
  $region2: #{sfconv_forward.3} parent=0 // loop_pre_header
    _
  $region3: #{sfconv_forward.3} parent=0 // loop_header
    %s12 = sphi 0, %s16
    %p13 = scmp.ge.s32.totalorder %s12, 4
    %s19 = sphi 0, %s31
    %s20 = sphi 0, %s27
    %s21 = sphi 0, %s19
    %s22 = sphi 0, %s20
    %s23 = sphi 0, %s21
    %s24 = sphi 0, %s22
    %s36 = sphi 0, %s38
    %s39 = sphi 0, %s36
    %s40 = sphi 0, %s39
    %s56 = sphi 0, %s40
    %s64 = sphi 0, %s66
    %s67 = sphi 0, %s64
    %s68 = sphi 0, %s67
    %s84 = sphi 0, %s68
    %s90 = sphi 0, %s92
    %s93 = sphi 0, %s90
    %s94 = sphi 0, %s93
    %s110 = sphi 0, %s94
    %s116 = sphi 0, %s118
    %s119 = sphi 0, %s116
    %s120 = sphi 0, %s119
    %s136 = sphi 0, %s120
    %s140 = sphi 0, %s140
    %s142 = sphi 0, %s140
    %s143 = sphi 0, %s142
    %s157 = sphi 0, %s143
    %s161 = sphi 0, %s161
    %s163 = sphi 0, %s161
    %s164 = sphi 0, %s163
    %s178 = sphi 0, %s164
    %s186 = sphi 0, %s188
    %s189 = sphi 0, %s186
    %s190 = sphi 0, %s189
    %s206 = sphi 0, %s190
  $region4: #{sfconv_forward.3} parent=0 // loop_header_branch
    %15 = sbr.rel (%p13) target = $region8
  $region5: #{sfconv_forward.3} parent=0 // loop_body
    %s17 = ssub.s32 %s12, 1
    %s18 = ssub.s32 %s12, 2
    %s25 = sadd.s32 1, %s20
    %p26 = scmp.ge.s32.totalorder %s25, 1
    %s27 = scalar_select %p26, 0, %s25
    %s28 = sadd.s32 1, %s19
    %s29 = scalar_select %p26, %s28, %s19
    %p30 = scmp.ge.s32.totalorder %s29, 2
    %s31 = scalar_select %p30, 0, %s29
    %s32 = ssub.s32 %s19, %s31
    %s33 = ssub.s32 %s20, %s27
    %s34 = sor.u32 %s32, %s33
    %p35 = scmp.eq.s32.totalorder %s34, 0
    %s37 = sadd.s32 %s36, 1
    %s38 = scalar_select %p35, %s36, %s37
    %p41 = pneg %p35
    %p42 = scmp.eq.s32.totalorder %s12, 1
    %p43 = por %p41, %p42
    %p44 = scmp.ne.s32.totalorder %s36, %s39
    %p45 = scmp.eq.s32.totalorder %s12, 0
    %p46 = por %p44, %p45
    %p47 = scmp.ne.s32.totalorder %s36, %s39
    %p48 = scmp.eq.s32.totalorder %s17, 1
    %p49 = por %p47, %p48
    %p50 = scmp.ne.s32.totalorder %s39, %s40
    %p51 = scmp.eq.s32.totalorder %s17, 0
    %p52 = por %p50, %p51
    %p53 = scmp.ne.s32.totalorder %s39, %s40
    %p54 = scmp.eq.s32.totalorder %s18, 1
    %p55 = por %p53, %p54
    %p57 = scmp.ne.s32.totalorder %s40, %s56
    %p58 = scmp.eq.s32.totalorder %s18, 0
    %p59 = por %p57, %p58
    %s60 = ssub.s32 %s19, %s31
    %s61 = ssub.s32 %s20, %s27
    %s62 = sor.u32 %s60, %s61
    %p63 = scmp.eq.s32.totalorder %s62, 0
    %s65 = sadd.s32 %s64, 1
    %s66 = scalar_select %p63, %s64, %s65
    %p69 = pneg %p63
    %p70 = scmp.eq.s32.totalorder %s12, 1
    %p71 = por %p69, %p70
    %p72 = scmp.ne.s32.totalorder %s64, %s67
    %p73 = scmp.eq.s32.totalorder %s12, 0
    %p74 = por %p72, %p73
    %p75 = scmp.ne.s32.totalorder %s64, %s67
    %p76 = scmp.eq.s32.totalorder %s17, 1
    %p77 = por %p75, %p76
    %p78 = scmp.ne.s32.totalorder %s67, %s68
    %p79 = scmp.eq.s32.totalorder %s17, 0
    %p80 = por %p78, %p79
    %p81 = scmp.ne.s32.totalorder %s67, %s68
    %p82 = scmp.eq.s32.totalorder %s18, 1
    %p83 = por %p81, %p82
    %p85 = scmp.ne.s32.totalorder %s68, %s84
    %p86 = scmp.eq.s32.totalorder %s18, 0
    %p87 = por %p85, %p86
    %s88 = ssub.s32 %s19, %s31
    %p89 = scmp.eq.s32.totalorder %s88, 0
    %s91 = sadd.s32 %s90, 1
    %s92 = scalar_select %p89, %s90, %s91
    %p95 = pneg %p89
    %p96 = scmp.eq.s32.totalorder %s12, 1
    %p97 = por %p95, %p96
    %p98 = scmp.ne.s32.totalorder %s90, %s93
    %p99 = scmp.eq.s32.totalorder %s12, 0
    %p100 = por %p98, %p99
    %p101 = scmp.ne.s32.totalorder %s90, %s93
    %p102 = scmp.eq.s32.totalorder %s17, 1
    %p103 = por %p101, %p102
    %p104 = scmp.ne.s32.totalorder %s93, %s94
    %p105 = scmp.eq.s32.totalorder %s17, 0
    %p106 = por %p104, %p105
    %p107 = scmp.ne.s32.totalorder %s93, %s94
    %p108 = scmp.eq.s32.totalorder %s18, 1
    %p109 = por %p107, %p108
    %p111 = scmp.ne.s32.totalorder %s94, %s110
    %p112 = scmp.eq.s32.totalorder %s18, 0
    %p113 = por %p111, %p112
    %s114 = ssub.s32 %s19, %s31
    %p115 = scmp.eq.s32.totalorder %s114, 0
    %s117 = sadd.s32 %s116, 1
    %s118 = scalar_select %p115, %s116, %s117
    %p121 = pneg %p115
    %p122 = scmp.eq.s32.totalorder %s12, 1
    %p123 = por %p121, %p122
    %p124 = scmp.ne.s32.totalorder %s116, %s119
    %p125 = scmp.eq.s32.totalorder %s12, 0
    %p126 = por %p124, %p125
    %p127 = scmp.ne.s32.totalorder %s116, %s119
    %p128 = scmp.eq.s32.totalorder %s17, 1
    %p129 = por %p127, %p128
    %p130 = scmp.ne.s32.totalorder %s119, %s120
    %p131 = scmp.eq.s32.totalorder %s17, 0
    %p132 = por %p130, %p131
    %p133 = scmp.ne.s32.totalorder %s119, %s120
    %p134 = scmp.eq.s32.totalorder %s18, 1
    %p135 = por %p133, %p134
    %p137 = scmp.ne.s32.totalorder %s120, %s136
    %p138 = scmp.eq.s32.totalorder %s18, 0
    %p139 = por %p137, %p138
    %s141 = sadd.s32 %s140, 1
    %p144 = scmp.eq.s32.totalorder %s12, 1
    %p145 = scmp.ne.s32.totalorder %s140, %s142
    %p146 = scmp.eq.s32.totalorder %s12, 0
    %p147 = por %p145, %p146
    %p148 = scmp.ne.s32.totalorder %s140, %s142
    %p149 = scmp.eq.s32.totalorder %s17, 1
    %p150 = por %p148, %p149
    %p151 = scmp.ne.s32.totalorder %s142, %s143
    %p152 = scmp.eq.s32.totalorder %s17, 0
    %p153 = por %p151, %p152
    %p154 = scmp.ne.s32.totalorder %s142, %s143
    %p155 = scmp.eq.s32.totalorder %s18, 1
    %p156 = por %p154, %p155
    %p158 = scmp.ne.s32.totalorder %s143, %s157
    %p159 = scmp.eq.s32.totalorder %s18, 0
    %p160 = por %p158, %p159
    %s162 = sadd.s32 %s161, 1
    %p165 = scmp.eq.s32.totalorder %s12, 1
    %p166 = scmp.ne.s32.totalorder %s161, %s163
    %p167 = scmp.eq.s32.totalorder %s12, 0
    %p168 = por %p166, %p167
    %p169 = scmp.ne.s32.totalorder %s161, %s163
    %p170 = scmp.eq.s32.totalorder %s17, 1
    %p171 = por %p169, %p170
    %p172 = scmp.ne.s32.totalorder %s163, %s164
    %p173 = scmp.eq.s32.totalorder %s17, 0
    %p174 = por %p172, %p173
    %p175 = scmp.ne.s32.totalorder %s163, %s164
    %p176 = scmp.eq.s32.totalorder %s18, 1
    %p177 = por %p175, %p176
    %p179 = scmp.ne.s32.totalorder %s164, %s178
    %p180 = scmp.eq.s32.totalorder %s18, 0
    %p181 = por %p179, %p180
    %s182 = ssub.s32 %s19, %s31
    %s183 = ssub.s32 %s20, %s27
    %s184 = sor.u32 %s182, %s183
    %p185 = scmp.eq.s32.totalorder %s184, 0
    %s187 = sadd.s32 %s186, 1
    %s188 = scalar_select %p185, %s186, %s187
    %p191 = pneg %p185
    %p192 = scmp.eq.s32.totalorder %s12, 1
    %p193 = por %p191, %p192
    %p194 = scmp.ne.s32.totalorder %s186, %s189
    %p195 = scmp.eq.s32.totalorder %s12, 0
    %p196 = por %p194, %p195
    %p197 = scmp.ne.s32.totalorder %s186, %s189
    %p198 = scmp.eq.s32.totalorder %s17, 1
    %p199 = por %p197, %p198
    %p200 = scmp.ne.s32.totalorder %s189, %s190
    %p201 = scmp.eq.s32.totalorder %s17, 0
    %p202 = por %p200, %p201
    %p203 = scmp.ne.s32.totalorder %s189, %s190
    %p204 = scmp.eq.s32.totalorder %s18, 1
    %p205 = por %p203, %p204
    %p207 = scmp.ne.s32.totalorder %s190, %s206
    %p208 = scmp.eq.s32.totalorder %s18, 0
    %p209 = por %p207, %p208
    %p210 = scmp.le.s32.totalorder 1, %s12
    %p211 = scmp.lt.s32.totalorder %s12, 3
    %p212 = pnand %p210, %p211
    %p213 = pneg %p212
    // Predicated region
    $region9: #{sfconv_forward.3} parent=5 // pred_check
      _
    $region10: #{sfconv_forward.3} parent=5 // pred_check_branch
      %215 = sbr.rel (%p212) target = $region12
    $region11: #{sfconv_forward.3} parent=5 // pred_region
      %s216 = ssub.s32 %s12, 1
      // Predicated region
      $region13: #{sfconv_forward.3} parent=11 // pred_check
        %p217 = pneg %p153
      $region14: #{sfconv_forward.3} parent=11 // pred_check_branch
        %219 = sbr.rel (%p217) target = $region16
      $region15: #{sfconv_forward.3} parent=11 // pred_region
        _
      $region16: #{sfconv_forward.3} parent=11 // pred_fallthru
        _
      // Predicated region
      $region17: #{sfconv_forward.3} parent=11 // pred_check
        %p220 = pneg %p174
      $region18: #{sfconv_forward.3} parent=11 // pred_check_branch
        %222 = sbr.rel (%p220) target = $region20
      $region19: #{sfconv_forward.3} parent=11 // pred_region
        _
      $region20: #{sfconv_forward.3} parent=11 // pred_fallthru
        _
    $region12: #{sfconv_forward.3} parent=5 // pred_fallthru
      _
    %p223 = scmp.lt.s32.totalorder %s12, 2
    // Predicated region
    $region21: #{sfconv_forward.3} parent=5 // pred_check
      %p224 = pneg %p223
    $region22: #{sfconv_forward.3} parent=5 // pred_check_branch
      %226 = sbr.rel (%p224) target = $region24
    $region23: #{sfconv_forward.3} parent=5 // pred_region
      // Predicated region
      $region25: #{sfconv_forward.3} parent=23 // pred_check
        %p227 = pneg %p46
      $region26: #{sfconv_forward.3} parent=23 // pred_check_branch
        %229 = sbr.rel (%p227) target = $region28
      $region27: #{sfconv_forward.3} parent=23 // pred_region
        %s230 = smul.u32 2, %s20
        %p231 = scmp.lt.s32.totalorder %s19, 1
        %s232 = scalar_select %p231, %s19, 1
        %p233 = scmp.lt.s32.totalorder %s230, 1
        %s234 = scalar_select %p233, %s230, 1
        %s235 = smul.addr %s232, 2
        %s236 = sadd.s32 %s234, %s235
        %s237 = smul.addr %s236, 4
        %s238 = scalar_lea.vmem %s0, %s237
        %s239 = smul.u32 2, %s20
      $region28: #{sfconv_forward.3} parent=23 // pred_fallthru
        _
      // Predicated region
      $region29: #{sfconv_forward.3} parent=23 // pred_check
        %p240 = pneg %p74
      $region30: #{sfconv_forward.3} parent=23 // pred_check_branch
        %242 = sbr.rel (%p240) target = $region32
      $region31: #{sfconv_forward.3} parent=23 // pred_region
        %s243 = smul.u32 2, %s20
        %p244 = scmp.lt.s32.totalorder %s19, 1
        %s245 = scalar_select %p244, %s19, 1
        %p246 = scmp.lt.s32.totalorder %s243, 1
        %s247 = scalar_select %p246, %s243, 1
        %s248 = smul.addr %s245, 2
        %s249 = sadd.s32 %s247, %s248
        %s250 = smul.addr %s249, 4
        %s251 = scalar_lea.vmem %s1, %s250
        %s252 = smul.u32 2, %s20
      $region32: #{sfconv_forward.3} parent=23 // pred_fallthru
        _
      // Predicated region
      $region33: #{sfconv_forward.3} parent=23 // pred_check
        %p253 = pneg %p100
      $region34: #{sfconv_forward.3} parent=23 // pred_check_branch
        %255 = sbr.rel (%p253) target = $region36
      $region35: #{sfconv_forward.3} parent=23 // pred_region
        %p256 = scmp.lt.s32.totalorder %s19, 1
        %s257 = scalar_select %p256, %s19, 1
        %s258 = smul.addr %s257, 8
        %s259 = scalar_lea.vmem %s2, %s258
      $region36: #{sfconv_forward.3} parent=23 // pred_fallthru
        _
      // Predicated region
      $region37: #{sfconv_forward.3} parent=23 // pred_check
        %p260 = pneg %p126
      $region38: #{sfconv_forward.3} parent=23 // pred_check_branch
        %262 = sbr.rel (%p260) target = $region40
      $region39: #{sfconv_forward.3} parent=23 // pred_region
        %p263 = scmp.lt.s32.totalorder %s19, 1
        %s264 = scalar_select %p263, %s19, 1
        %s265 = smul.addr %s264, 8
        %s266 = scalar_lea.vmem %s3, %s265
      $region40: #{sfconv_forward.3} parent=23 // pred_fallthru
        _
    $region24: #{sfconv_forward.3} parent=5 // pred_fallthru
      _
    %p267 = scmp.le.s32.totalorder 1, %s12
    %p268 = scmp.lt.s32.totalorder %s12, 3
    %p269 = pnand %p267, %p268
    %p270 = pneg %p269
    // Predicated region
    $region41: #{sfconv_forward.3} parent=5 // pred_check
      _
    $region42: #{sfconv_forward.3} parent=5 // pred_check_branch
      %272 = sbr.rel (%p269) target = $region44
    $region43: #{sfconv_forward.3} parent=5 // pred_region
      %s273 = ssub.s32 %s12, 1
      %s274 = smul.u32 2, %s22
      %p275 = scmp.lt.s32.totalorder %s21, 1
      %s276 = scalar_select %p275, %s21, 1
      %p277 = scmp.lt.s32.totalorder %s274, 1
      %s278 = scalar_select %p277, %s274, 1
      %s279 = smul.addr %s276, 2
      %s280 = sadd.s32 %s278, %s279
      %s281 = smul.addr %s280, 4
      %s282 = scalar_lea.vmem %s0, %s281
      %p283 = pneg %p52
      %p284 = pneg %p49
      %s285 = smul.u32 2, %s22
      %p286 = scmp.lt.s32.totalorder %s21, 1
      %s287 = scalar_select %p286, %s21, 1
      %p288 = scmp.lt.s32.totalorder %s285, 1
      %s289 = scalar_select %p288, %s285, 1
      %s290 = smul.addr %s287, 2
      %s291 = sadd.s32 %s289, %s290
      %s292 = smul.addr %s291, 4
      %s293 = scalar_lea.vmem %s1, %s292
      %p294 = pneg %p80
      %p295 = pneg %p77
      %p296 = scmp.lt.s32.totalorder %s21, 1
      %s297 = scalar_select %p296, %s21, 1
      %s298 = smul.addr %s297, 8
      %s299 = scalar_lea.vmem %s2, %s298
      %p300 = pneg %p106
      %p301 = pneg %p103
      %p302 = scmp.lt.s32.totalorder %s21, 1
      %s303 = scalar_select %p302, %s21, 1
      %s304 = smul.addr %s303, 8
      %s305 = scalar_lea.vmem %s3, %s304
      %p306 = pneg %p132
      %p307 = pneg %p129
      %p308 = pneg %p153
      %p309 = pneg %p150
      %p310 = pneg %p174
      %p311 = pneg %p171
      %p312 = pneg %p202
      %p313 = pneg %p199
      %s314 = smul.u32 2, %s22
      %p315 = scmp.lt.s32.totalorder %s21, 1
      %s316 = scalar_select %p315, %s21, 1
      %p317 = scmp.lt.s32.totalorder %s314, 1
      %s318 = scalar_select %p317, %s314, 1
      %s319 = smul.addr %s316, 2
      %s320 = sadd.s32 %s318, %s319
      %s321 = smul.addr %s320, 8
      %s322 = scalar_lea.vmem %s6, %s321
      %s323 = smul.u32 2, %s22
      %p324 = scmp.lt.s32.totalorder %s21, 1
      %s325 = scalar_select %p324, %s21, 1
      %p326 = scmp.lt.s32.totalorder %s323, 1
      %s327 = scalar_select %p326, %s323, 1
      %s328 = smul.addr %s325, 2
      %s329 = sadd.s32 %s327, %s328
      %s330 = smul.addr %s329, 4
      %s331 = scalar_lea.vmem %s0, %s330
      %s332 = smul.u32 2, %s22
      %s333 = smul.u32 2, %s22
      %p334 = scmp.lt.s32.totalorder %s21, 1
      %s335 = scalar_select %p334, %s21, 1
      %p336 = scmp.lt.s32.totalorder %s333, 1
      %s337 = scalar_select %p336, %s333, 1
      %s338 = smul.addr %s335, 2
      %s339 = sadd.s32 %s337, %s338
      %s340 = smul.addr %s339, 4
      %s341 = scalar_lea.vmem %s1, %s340
      %s342 = smul.u32 2, %s22
      %p343 = scmp.lt.s32.totalorder %s21, 1
      %s344 = scalar_select %p343, %s21, 1
      %s345 = smul.addr %s344, 8
      %s346 = scalar_lea.vmem %s2, %s345
      %p347 = scmp.lt.s32.totalorder %s21, 1
      %s348 = scalar_select %p347, %s21, 1
      %s349 = smul.addr %s348, 8
      %s350 = scalar_lea.vmem %s3, %s349
      %s351 = smul.u32 2, %s22
      %p352 = scmp.lt.s32.totalorder %s21, 1
      %s353 = scalar_select %p352, %s21, 1
      %p354 = scmp.lt.s32.totalorder %s351, 1
      %s355 = scalar_select %p354, %s351, 1
      %s356 = smul.addr %s353, 2
      %s357 = sadd.s32 %s355, %s356
      %s358 = smul.addr %s357, 8
      %s359 = scalar_lea.vmem %s6, %s358
      %s360 = smul.u32 2, %s22
      %v361 = vld [vmem:[%s331] sm:$0xff]
      %v362 = vunpack.c.l.bf16 %v361
      %v363 = vunpack.c.h.bf16 %v361
      %v364 = vld [vmem:[%s341] sm:$0xff]
      %v365 = vunpack.c.l.bf16 %v364
      %v366 = vunpack.c.h.bf16 %v364
      %v367 = vld [vmem:[%s350] sm:$0xff]
      %369 = vset.pattern.permute.xlu0 0
      %370 = vperm.xlu0 %369, %v367
      %v371 = vpop.permute.xlu0 %370
      %v373 = vmul.f32 %v365, %v371
      %v374 = vmul.f32 %v366, %v371
      %v375 = vld [vmem:[%s346] sm:$0xff]
      %377 = vset.pattern.permute.xlu0 0
      %378 = vperm.xlu0 %377, %v375
      %v379 = vpop.permute.xlu0 %378
      %v381 = vmul.f32 %v362, %v379
      %v382 = vmul.f32 %v363, %v379
      %v383 = vadd.f32 %v373, %v381
      %v384 = vadd.f32 %v374, %v382
      %v385 = vld [vmem:[%s4] sm:$0xff]
      %v386 = vld [vmem:[%s5] sm:$0xff]
      %388 = vset.pattern.permute.xlu0 0
      %389 = vperm.xlu0 %388, %v386
      %v390 = vpop.permute.xlu0 %389
      %vm392 = vcmask 64512
      %v394 = vsel %vm392, %v385, 0
      %396 = vmatpush.msra.mxu0 0.0
      %397 = vmatpush.msra.mxu0 0.0
      %398 = vmatpush.msra.mxu0 0.0
      %399 = vmatpush.msra.mxu0 0.0
      %400 = vmatpush.msra.mxu0 0.0
      %401 = vmatpush.msra.mxu0 0.0
      %402 = vmatpush.msra.mxu0 0.0
      %403 = vmatpush.msra.mxu0 0.0
      %404 = vmatpush.msra.mxu0 0.0
      %405 = vmatpush.msra.mxu0 0.0
      %406 = vmatpush.msra.mxu0 0.0
      %407 = vmatpush.msra.mxu0 0.0
      %408 = vmatpush.msra.mxu0 0.0
      %409 = vmatpush.msra.mxu0 0.0
      %410 = vmatpush.msra.mxu0 0.0
      %411 = vmatpush.msra.mxu0 %v383
      %412 = vmatmul.f32.gmra.mxu0 %v394
      %v413 = vpop.f32.mrf.mxu0
      %v414 = vadd.f32 %v390, %v413
      %415 = vdwg.mxu0
      %416 = vmatpush.msra.mxu0 0.0
      %417 = vmatpush.msra.mxu0 0.0
      %418 = vmatpush.msra.mxu0 0.0
      %419 = vmatpush.msra.mxu0 0.0
      %420 = vmatpush.msra.mxu0 0.0
      %421 = vmatpush.msra.mxu0 0.0
      %422 = vmatpush.msra.mxu0 0.0
      %423 = vmatpush.msra.mxu0 0.0
      %424 = vmatpush.msra.mxu0 0.0
      %425 = vmatpush.msra.mxu0 0.0
      %426 = vmatpush.msra.mxu0 0.0
      %427 = vmatpush.msra.mxu0 0.0
      %428 = vmatpush.msra.mxu0 0.0
      %429 = vmatpush.msra.mxu0 0.0
      %430 = vmatpush.msra.mxu0 0.0
      %431 = vmatpush.msra.mxu0 %v384
      %432 = vmatmul.f32.gmra.mxu0 %v394
      %v433 = vpop.f32.mrf.mxu0
      %v434 = vadd.f32 %v390, %v433
      %435 = vdwg.mxu0
      %436 = vst [vmem:[%s359] sm:$0xff] %v414
      %437 = vst [vmem:[%s359 + $0x8] sm:$0xff] %v434
      %s438 = smul.u32 2, %s22
      %p439 = scmp.lt.s32.totalorder %s21, 1
      %s440 = scalar_select %p439, %s21, 1
      %p441 = scmp.lt.s32.totalorder %s438, 1
      %s442 = scalar_select %p441, %s438, 1
      %s443 = smul.addr %s440, 2
      %s444 = sadd.s32 %s442, %s443
      %s445 = smul.addr %s444, 8
      %s446 = scalar_lea.vmem %s6, %s445
      // Predicated region
      $region45: #{sfconv_forward.3} parent=43 // pred_check
        %p447 = pneg %p199
      $region46: #{sfconv_forward.3} parent=43 // pred_check_branch
        %449 = sbr.rel (%p447) target = $region48
      $region47: #{sfconv_forward.3} parent=43 // pred_region
        %s450 = smul.u32 2, %s22
      $region48: #{sfconv_forward.3} parent=43 // pred_fallthru
        _
    $region44: #{sfconv_forward.3} parent=5 // pred_fallthru
      _
    %p451 = scmp.le.s32.totalorder 2, %s12
    // Predicated region
    $region49: #{sfconv_forward.3} parent=5 // pred_check
      %p452 = pneg %p451
    $region50: #{sfconv_forward.3} parent=5 // pred_check_branch
      %454 = sbr.rel (%p452) target = $region52
    $region51: #{sfconv_forward.3} parent=5 // pred_region
      %s455 = ssub.s32 %s12, 2
      // Predicated region
      $region53: #{sfconv_forward.3} parent=51 // pred_check
        %p456 = pneg %p205
      $region54: #{sfconv_forward.3} parent=51 // pred_check_branch
        %458 = sbr.rel (%p456) target = $region56
      $region55: #{sfconv_forward.3} parent=51 // pred_region
        %s459 = smul.u32 2, %s24
        %p460 = scmp.lt.s32.totalorder %s23, 1
        %s461 = scalar_select %p460, %s23, 1
        %p462 = scmp.lt.s32.totalorder %s459, 1
        %s463 = scalar_select %p462, %s459, 1
        %s464 = smul.addr %s461, 2
        %s465 = sadd.s32 %s463, %s464
        %s466 = smul.addr %s465, 8
        %s467 = scalar_lea.vmem %s6, %s466
      $region56: #{sfconv_forward.3} parent=51 // pred_fallthru
        _
    $region52: #{sfconv_forward.3} parent=5 // pred_fallthru
      _
  $region6: #{sfconv_forward.3} parent=0 // loop_footer
    %s16 = sadd.s32 1, %s12
  $region7: #{sfconv_forward.3} parent=0 // loop_footer_branch
    %11 = sbr.rel target = $region3
  $region8: #{sfconv_forward.3} parent=0 // loop_exit
    _

// kernel: sfconv_forward.2
$region0: #{sfconv_forward.2}
  #allocation0 [shape = 'u32[]', space=smem, size = 0x4, offset = 0x4, fixed_abs, tag = 'smem constant byte address 0x4 - core index']
  #allocation1 [shape = 'u32[72,128]{1,0:T(1,128)}', space=vmem, size = 0x9000, scoped, tag = 'internal scratch']
  %s0 = inlined_call_operand.vmem [shape: bf16[2,8,256], index: 0, kind: input, shape index: {}]
  %s1 = inlined_call_operand.vmem [shape: bf16[2,8,256], index: 1, kind: input, shape index: {}]
  %s2 = inlined_call_operand.vmem [shape: f32[2,1,8,1], index: 2, kind: output, shape index: {}]
  %s3 = sld [smem:[#allocation0]]
  $region45: #{sfconv_forward.2} parent=0
    _
  %s5 = ssub.s32 1, %s3
  %s6 = scalar_select 0, %s5, %s3
  loop: start=0, step=1, limit=4
  $region2: #{sfconv_forward.2} parent=0 // loop_pre_header
    _
  $region3: #{sfconv_forward.2} parent=0 // loop_header
    %s8 = sphi 0, %s12
    %p9 = scmp.ge.s32.totalorder %s8, 4
    %s15 = sphi 0, %s34
    %s16 = sphi 0, %s30
    %s17 = sphi 0, %s26
    %s18 = sphi 0, %s15
    %s19 = sphi 0, %s16
    %s20 = sphi 0, %s17
    %s21 = sphi 0, %s18
    %s22 = sphi 0, %s19
    %s23 = sphi 0, %s20
    %s41 = sphi 0, %s43
    %s44 = sphi 0, %s41
    %s45 = sphi 0, %s44
    %s61 = sphi 0, %s45
    %s71 = sphi 0, %s73
    %s74 = sphi 0, %s71
    %s75 = sphi 0, %s74
    %s91 = sphi 0, %s75
    %s99 = sphi 0, %s101
    %s102 = sphi 0, %s99
    %s103 = sphi 0, %s102
    %s119 = sphi 0, %s103
  $region4: #{sfconv_forward.2} parent=0 // loop_header_branch
    %11 = sbr.rel (%p9) target = $region8
  $region5: #{sfconv_forward.2} parent=0 // loop_body
    %s13 = ssub.s32 %s8, 1
    %s14 = ssub.s32 %s8, 2
    %s24 = sadd.s32 1, %s17
    %p25 = scmp.ge.s32.totalorder %s24, 1
    %s26 = scalar_select %p25, 0, %s24
    %s27 = sadd.s32 1, %s16
    %s28 = scalar_select %p25, %s27, %s16
    %p29 = scmp.ge.s32.totalorder %s28, 1
    %s30 = scalar_select %p29, 0, %s28
    %s31 = sadd.s32 1, %s15
    %s32 = scalar_select %p29, %s31, %s15
    %p33 = scmp.ge.s32.totalorder %s32, 2
    %s34 = scalar_select %p33, 0, %s32
    %s35 = sadd.s32 %s16, %s17
    %s36 = sadd.s32 %s30, %s26
    %s37 = ssub.s32 %s15, %s34
    %s38 = ssub.s32 %s35, %s36
    %s39 = sor.u32 %s37, %s38
    %p40 = scmp.eq.s32.totalorder %s39, 0
    %s42 = sadd.s32 %s41, 1
    %s43 = scalar_select %p40, %s41, %s42
    %p46 = pneg %p40
    %p47 = scmp.eq.s32.totalorder %s8, 1
    %p48 = por %p46, %p47
    %p49 = scmp.ne.s32.totalorder %s41, %s44
    %p50 = scmp.eq.s32.totalorder %s8, 0
    %p51 = por %p49, %p50
    %p52 = scmp.ne.s32.totalorder %s41, %s44
    %p53 = scmp.eq.s32.totalorder %s13, 1
    %p54 = por %p52, %p53
    %p55 = scmp.ne.s32.totalorder %s44, %s45
    %p56 = scmp.eq.s32.totalorder %s13, 0
    %p57 = por %p55, %p56
    %p58 = scmp.ne.s32.totalorder %s44, %s45
    %p59 = scmp.eq.s32.totalorder %s14, 1
    %p60 = por %p58, %p59
    %p62 = scmp.ne.s32.totalorder %s45, %s61
    %p63 = scmp.eq.s32.totalorder %s14, 0
    %p64 = por %p62, %p63
    %s65 = sadd.s32 %s16, %s17
    %s66 = sadd.s32 %s30, %s26
    %s67 = ssub.s32 %s15, %s34
    %s68 = ssub.s32 %s65, %s66
    %s69 = sor.u32 %s67, %s68
    %p70 = scmp.eq.s32.totalorder %s69, 0
    %s72 = sadd.s32 %s71, 1
    %s73 = scalar_select %p70, %s71, %s72
    %p76 = pneg %p70
    %p77 = scmp.eq.s32.totalorder %s8, 1
    %p78 = por %p76, %p77
    %p79 = scmp.ne.s32.totalorder %s71, %s74
    %p80 = scmp.eq.s32.totalorder %s8, 0
    %p81 = por %p79, %p80
    %p82 = scmp.ne.s32.totalorder %s71, %s74
    %p83 = scmp.eq.s32.totalorder %s13, 1
    %p84 = por %p82, %p83
    %p85 = scmp.ne.s32.totalorder %s74, %s75
    %p86 = scmp.eq.s32.totalorder %s13, 0
    %p87 = por %p85, %p86
    %p88 = scmp.ne.s32.totalorder %s74, %s75
    %p89 = scmp.eq.s32.totalorder %s14, 1
    %p90 = por %p88, %p89
    %p92 = scmp.ne.s32.totalorder %s75, %s91
    %p93 = scmp.eq.s32.totalorder %s14, 0
    %p94 = por %p92, %p93
    %s95 = ssub.s32 %s15, %s34
    %s96 = ssub.s32 %s16, %s30
    %s97 = sor.u32 %s95, %s96
    %p98 = scmp.eq.s32.totalorder %s97, 0
    %s100 = sadd.s32 %s99, 1
    %s101 = scalar_select %p98, %s99, %s100
    %p104 = pneg %p98
    %p105 = scmp.eq.s32.totalorder %s8, 1
    %p106 = por %p104, %p105
    %p107 = scmp.ne.s32.totalorder %s99, %s102
    %p108 = scmp.eq.s32.totalorder %s8, 0
    %p109 = por %p107, %p108
    %p110 = scmp.ne.s32.totalorder %s99, %s102
    %p111 = scmp.eq.s32.totalorder %s13, 1
    %p112 = por %p110, %p111
    %p113 = scmp.ne.s32.totalorder %s102, %s103
    %p114 = scmp.eq.s32.totalorder %s13, 0
    %p115 = por %p113, %p114
    %p116 = scmp.ne.s32.totalorder %s102, %s103
    %p117 = scmp.eq.s32.totalorder %s14, 1
    %p118 = por %p116, %p117
    %p120 = scmp.ne.s32.totalorder %s103, %s119
    %p121 = scmp.eq.s32.totalorder %s14, 0
    %p122 = por %p120, %p121
    %p123 = scmp.le.s32.totalorder 1, %s8
    %p124 = scmp.lt.s32.totalorder %s8, 3
    %p125 = pnand %p123, %p124
    %p126 = pneg %p125
    // Predicated region
    $region9: #{sfconv_forward.2} parent=5 // pred_check
      _
    $region10: #{sfconv_forward.2} parent=5 // pred_check_branch
      %128 = sbr.rel (%p125) target = $region12
    $region11: #{sfconv_forward.2} parent=5 // pred_region
      %s129 = ssub.s32 %s8, 1
    $region12: #{sfconv_forward.2} parent=5 // pred_fallthru
      _
    %p130 = scmp.lt.s32.totalorder %s8, 2
    // Predicated region
    $region13: #{sfconv_forward.2} parent=5 // pred_check
      %p131 = pneg %p130
    $region14: #{sfconv_forward.2} parent=5 // pred_check_branch
      %133 = sbr.rel (%p131) target = $region16
    $region15: #{sfconv_forward.2} parent=5 // pred_region
      // Predicated region
      $region17: #{sfconv_forward.2} parent=15 // pred_check
        %p134 = pneg %p51
      $region18: #{sfconv_forward.2} parent=15 // pred_check_branch
        %136 = sbr.rel (%p134) target = $region20
      $region19: #{sfconv_forward.2} parent=15 // pred_region
        %s137 = sadd.s32 %s16, %s17
        %s138 = smul.u32 2, %s137
        %p139 = scmp.lt.s32.totalorder %s15, 1
        %s140 = scalar_select %p139, %s15, 1
        %p141 = scmp.lt.s32.totalorder %s138, 1
        %s142 = scalar_select %p141, %s138, 1
        %s143 = smul.addr %s140, 2
        %s144 = sadd.s32 %s142, %s143
        %s145 = smul.addr %s144, 4
        %s146 = scalar_lea.vmem %s0, %s145
        %s147 = sadd.s32 %s16, %s17
        %s148 = smul.u32 2, %s147
      $region20: #{sfconv_forward.2} parent=15 // pred_fallthru
        _
      // Predicated region
      $region21: #{sfconv_forward.2} parent=15 // pred_check
        %p149 = pneg %p81
      $region22: #{sfconv_forward.2} parent=15 // pred_check_branch
        %151 = sbr.rel (%p149) target = $region24
      $region23: #{sfconv_forward.2} parent=15 // pred_region
        %s152 = sadd.s32 %s16, %s17
        %s153 = smul.u32 2, %s152
        %p154 = scmp.lt.s32.totalorder %s15, 1
        %s155 = scalar_select %p154, %s15, 1
        %p156 = scmp.lt.s32.totalorder %s153, 1
        %s157 = scalar_select %p156, %s153, 1
        %s158 = smul.addr %s155, 2
        %s159 = sadd.s32 %s157, %s158
        %s160 = smul.addr %s159, 4
        %s161 = scalar_lea.vmem %s1, %s160
        %s162 = sadd.s32 %s16, %s17
        %s163 = smul.u32 2, %s162
      $region24: #{sfconv_forward.2} parent=15 // pred_fallthru
        _
    $region16: #{sfconv_forward.2} parent=5 // pred_fallthru
      _
    %p164 = scmp.le.s32.totalorder 1, %s8
    %p165 = scmp.lt.s32.totalorder %s8, 3
    %p166 = pnand %p164, %p165
    %p167 = pneg %p166
    // Predicated region
    $region25: #{sfconv_forward.2} parent=5 // pred_check
      _
    $region26: #{sfconv_forward.2} parent=5 // pred_check_branch
      %169 = sbr.rel (%p166) target = $region28
    $region27: #{sfconv_forward.2} parent=5 // pred_region
      %s170 = ssub.s32 %s8, 1
      %s171 = sadd.s32 %s19, %s20
      %s172 = smul.u32 2, %s171
      %p173 = scmp.lt.s32.totalorder %s18, 1
      %s174 = scalar_select %p173, %s18, 1
      %p175 = scmp.lt.s32.totalorder %s172, 1
      %s176 = scalar_select %p175, %s172, 1
      %s177 = smul.addr %s174, 2
      %s178 = sadd.s32 %s176, %s177
      %s179 = smul.addr %s178, 4
      %s180 = scalar_lea.vmem %s0, %s179
      %p181 = pneg %p57
      %p182 = pneg %p54
      %s183 = sadd.s32 %s19, %s20
      %s184 = smul.u32 2, %s183
      %p185 = scmp.lt.s32.totalorder %s18, 1
      %s186 = scalar_select %p185, %s18, 1
      %p187 = scmp.lt.s32.totalorder %s184, 1
      %s188 = scalar_select %p187, %s184, 1
      %s189 = smul.addr %s186, 2
      %s190 = sadd.s32 %s188, %s189
      %s191 = smul.addr %s190, 4
      %s192 = scalar_lea.vmem %s1, %s191
      %p193 = pneg %p87
      %p194 = pneg %p84
      %p195 = pneg %p115
      %p196 = pneg %p112
      %p197 = scmp.lt.s32.totalorder %s18, 1
      %s198 = scalar_select %p197, %s18, 1
      %p199 = scmp.lt.s32.totalorder %s19, 0
      %s200 = scalar_select %p199, %s19, 0
      %s201 = sadd.s32 %s200, %s198
      %s202 = smul.addr %s201, 8
      %s203 = scalar_lea.vmem %s2, %s202
      %s204 = sadd.s32 %s19, %s20
      %s205 = smul.u32 2, %s204
      %p206 = scmp.lt.s32.totalorder %s18, 1
      %s207 = scalar_select %p206, %s18, 1
      %p208 = scmp.lt.s32.totalorder %s205, 1
      %s209 = scalar_select %p208, %s205, 1
      %s210 = smul.addr %s207, 2
      %s211 = sadd.s32 %s209, %s210
      %s212 = smul.addr %s211, 4
      %s213 = scalar_lea.vmem %s0, %s212
      %s214 = sadd.s32 %s19, %s20
      %s215 = smul.u32 2, %s214
      %s216 = sadd.s32 %s19, %s20
      %s217 = smul.u32 2, %s216
      %p218 = scmp.lt.s32.totalorder %s18, 1
      %s219 = scalar_select %p218, %s18, 1
      %p220 = scmp.lt.s32.totalorder %s217, 1
      %s221 = scalar_select %p220, %s217, 1
      %s222 = smul.addr %s219, 2
      %s223 = sadd.s32 %s221, %s222
      %s224 = smul.addr %s223, 4
      %s225 = scalar_lea.vmem %s1, %s224
      %s226 = sadd.s32 %s19, %s20
      %s227 = smul.u32 2, %s226
      %p228 = scmp.lt.s32.totalorder %s18, 1
      %s229 = scalar_select %p228, %s18, 1
      %p230 = scmp.lt.s32.totalorder %s19, 0
      %s231 = scalar_select %p230, %s19, 0
      %s232 = sadd.s32 %s231, %s229
      %s233 = smul.addr %s232, 8
      %s234 = scalar_lea.vmem %s2, %s233
      %p235 = scmp.eq.s32.totalorder %s20, 0
      // Predicated region
      $region29: #{sfconv_forward.2} parent=27 // pred_check
        %p236 = pneg %p235
      $region30: #{sfconv_forward.2} parent=27 // pred_check_branch
        %238 = sbr.rel (%p236) target = $region32
      $region31: #{sfconv_forward.2} parent=27 // pred_region
        %vm239 = vcmask 7168
        %240 = vst.msk [vmem:[%s234] sm:$0xff] %vm239, 0.0
      $region32: #{sfconv_forward.2} parent=27 // pred_fallthru
        _
      %v241 = vld [vmem:[%s213] sm:$0xff]
      %v242 = vunpack.c.l.bf16 %v241
      %v243 = vunpack.c.h.bf16 %v241
      %v244 = vld [vmem:[%s225] sm:$0xff]
      %v245 = vunpack.c.l.bf16 %v244
      %v246 = vunpack.c.h.bf16 %v244
      %v247 = vadd.f32 %v242, %v245
      %v248 = vadd.f32 %v243, %v246
      %v249 = vld [vmem:[%s234] sm:$0xff]
      %v250 = vadd.f32 %v247, %v248
      %251 = vadd.xlane.f32.xlu0 %v250
      %v252 = vpop.xlane.xlu0 %251
      %v253 = vadd.f32 %v249, %v252
      %vm254 = vcmask 7168
      %255 = vst.msk [vmem:[%s234] sm:$0xff] %vm254, %v253
      %p256 = scmp.lt.s32.totalorder %s18, 1
      %s257 = scalar_select %p256, %s18, 1
      %p258 = scmp.lt.s32.totalorder %s19, 0
      %s259 = scalar_select %p258, %s19, 0
      %s260 = sadd.s32 %s259, %s257
      %s261 = smul.addr %s260, 8
      %s262 = scalar_lea.vmem %s2, %s261
      // Predicated region
      $region33: #{sfconv_forward.2} parent=27 // pred_check
        %p263 = pneg %p112
      $region34: #{sfconv_forward.2} parent=27 // pred_check_branch
        %265 = sbr.rel (%p263) target = $region36
      $region35: #{sfconv_forward.2} parent=27 // pred_region
        _
      $region36: #{sfconv_forward.2} parent=27 // pred_fallthru
        _
    $region28: #{sfconv_forward.2} parent=5 // pred_fallthru
      _
    %p266 = scmp.le.s32.totalorder 2, %s8
    // Predicated region
    $region37: #{sfconv_forward.2} parent=5 // pred_check
      %p267 = pneg %p266
    $region38: #{sfconv_forward.2} parent=5 // pred_check_branch
      %269 = sbr.rel (%p267) target = $region40
    $region39: #{sfconv_forward.2} parent=5 // pred_region
      %s270 = ssub.s32 %s8, 2
      // Predicated region
      $region41: #{sfconv_forward.2} parent=39 // pred_check
        %p271 = pneg %p118
      $region42: #{sfconv_forward.2} parent=39 // pred_check_branch
        %273 = sbr.rel (%p271) target = $region44
      $region43: #{sfconv_forward.2} parent=39 // pred_region
        %p274 = scmp.lt.s32.totalorder %s21, 1
        %s275 = scalar_select %p274, %s21, 1
        %p276 = scmp.lt.s32.totalorder %s22, 0
        %s277 = scalar_select %p276, %s22, 0
        %s278 = sadd.s32 %s277, %s275
        %s279 = smul.addr %s278, 8
        %s280 = scalar_lea.vmem %s2, %s279
      $region44: #{sfconv_forward.2} parent=39 // pred_fallthru
        _
    $region40: #{sfconv_forward.2} parent=5 // pred_fallthru
      _
  $region6: #{sfconv_forward.2} parent=0 // loop_footer
    %s12 = sadd.s32 1, %s8
  $region7: #{sfconv_forward.2} parent=0 // loop_footer_branch
    %7 = sbr.rel target = $region3
  $region8: #{sfconv_forward.2} parent=0 // loop_exit
    _

</llo_original>
